<compile_context>
chip_gen: v7x
topology: tpu7x:2x2x1
jax: 0.10.0
libtpu: 0.0.40
codegen_flags: <defaults>
</compile_context>

<pallas_src>
import jax
import jax.numpy as jnp
from jax.experimental import pallas as pl
from jax.experimental.pallas import tpu as pltpu


def _round_up(n: int, m: int) -> int:
    return (n + m - 1) // m * m


def residual_block_kernel(x_ref, w1t_ref, w2t_ref, o_ref, acc_ref):
    k = pl.program_id(1)                      # hidden-chunk (reduction) index
    x = x_ref[...]                            # (tb, Fp), input dtype

    @pl.when(k == 0)
    def _init():
        # Seed the f32 accumulator with the residual.
        acc_ref[...] = x.astype(jnp.float32)

    # linear1 chunk: (tb, Fp) @ (Fp, th) -> (tb, th); f32 accumulation on MXU.
    h = jnp.dot(x.astype(w1t_ref.dtype), w1t_ref[...],
                preferred_element_type=jnp.float32)
    # SiLU in f32: h * sigmoid(h).  exp + approx reciprocal stay on the EUP slot.
    h = h * pl.reciprocal(1.0 + jnp.exp(-h), approx=True)
    # linear2 chunk: (tb, th) @ (th, Fp) -> (tb, Fp); accumulate in f32.
    acc_ref[...] += jnp.dot(h.astype(w2t_ref.dtype), w2t_ref[...],
                            preferred_element_type=jnp.float32)

    @pl.when(k == pl.num_programs(1) - 1)
    def _finalize():
        o_ref[...] = acc_ref[...].astype(o_ref.dtype)


def precompute_weights(w1, w2, *, compute_dtype=None):
    """One-time weight prep (do at init, NOT per forward call): transpose the
    PyTorch (out,in) layout to matmul layout, zero-pad feature/hidden dims to
    multiples of 128 (lane-dense), optionally cast (e.g. bf16 for the MXU).
    Zero padding keeps the math exact."""
    F2, F = w1.shape
    assert F2 == 2 * F and w2.shape == (F, F2)
    if compute_dtype is None:
        compute_dtype = w1.dtype
    Fp = _round_up(F, 128)
    Hp = _round_up(F2, 128)
    w1t = jnp.zeros((Fp, Hp), compute_dtype).at[:F, :F2].set(
        w1.T.astype(compute_dtype))
    w2t = jnp.zeros((Hp, Fp), compute_dtype).at[:F2, :F].set(
        w2.T.astype(compute_dtype))
    return w1t, w2t


def residual_block(x, w1t, w2t, *, block_b=256):
    """x: (B, F).  w1t: (Fp, Hp), w2t: (Hp, Fp) from precompute_weights()."""
    B, F = x.shape
    Fp, Hp = w1t.shape
    assert w2t.shape == (Hp, Fp) and F <= Fp

    # Pad input features to the padded (lane-dense) weight layout.
    x_p = x if Fp == F else jnp.zeros((B, Fp), x.dtype).at[:, :F].set(x)

    # Batch tile: multiple of 8 sublanes; big enough to fill the MXU M dim and
    # amortize per-step overhead, small enough to pipeline over the batch.
    tb = min(_round_up(block_b, 8), _round_up(B, 8))

    # Hidden-chunk size: <=512 lanes so weight chunks + intermediate stay
    # bounded in VMEM (required for v7x's 64 MiB) regardless of F.
    if Hp <= 512:
        th = Hp
    elif Hp % 512 == 0:
        th = 512
    elif Hp % 256 == 0:
        th = 256
    else:
        th = 128
    num_i = pl.cdiv(B, tb)
    num_k = Hp // th
    grid = (num_i, num_k)

    x_bytes = jnp.dtype(x.dtype).itemsize
    w_bytes = jnp.dtype(w1t.dtype).itemsize
    # Double-buffered x / out tiles + double-buffered weight chunks + f32 acc.
    vmem_est = (2 * tb * Fp * x_bytes            # x tile
                + 2 * tb * Fp * x_bytes          # out tile
                + 2 * Fp * th * w_bytes          # W1^T chunk
                + 2 * th * Fp * w_bytes          # W2^T chunk
                + tb * Fp * 4)                   # f32 accumulator
    # Explicit scoped-VMEM budget with headroom.
    vmem_limit = int(min(max(vmem_est * 5 // 4 + (4 << 20), 32 << 20),
                         100 << 20))

    weight_passes = 1 if num_k == 1 else num_i   # constant index map => 1 fetch
    cost = pl.CostEstimate(
        flops=4 * B * Fp * Hp,                         # two matmuls
        transcendentals=2 * B * Hp,                    # exp + reciprocal
        bytes_accessed=int(2 * B * Fp * x_bytes        # x + out
                           + 2 * Fp * Hp * w_bytes * weight_passes),
    )

    # NOTE: when num_k == 1 the weight index maps are constant, so Pallas DMAs
    # each weight exactly once and keeps it resident; when num_k > 1 the weight
    # chunks stream and default double-buffering hides that DMA under the MXU.
    out_p = pl.pallas_call(
        residual_block_kernel,
        out_shape=jax.ShapeDtypeStruct((B, Fp), x.dtype),
        grid_spec=pltpu.PrefetchScalarGridSpec(
            num_scalar_prefetch=0,
            grid=grid,
            in_specs=[
                pl.BlockSpec((tb, Fp), lambda i, k: (i, 0)),   # x tile
                pl.BlockSpec((Fp, th), lambda i, k: (0, k)),   # W1^T chunk
                pl.BlockSpec((th, Fp), lambda i, k: (k, 0)),   # W2^T chunk
            ],
            out_specs=pl.BlockSpec((tb, Fp), lambda i, k: (i, 0)),
            scratch_shapes=[pltpu.VMEM((tb, Fp), jnp.float32)],
        ),
        compiler_params=pltpu.CompilerParams(
            dimension_semantics=("parallel", "arbitrary"),
            vmem_limit_bytes=vmem_limit,
        ),
        cost_estimate=cost,
    )(x_p, w1t, w2t)

    return out_p if Fp == F else out_p[:, :F]


def residual_block_ref(x, w1, w2):
    h = x @ w1.T
    h = h * jax.nn.sigmoid(h)
    return x + h @ w2.T


if __name__ == "__main__":
    key = jax.random.PRNGKey(0)
    k_x, k_w1, k_w2 = jax.random.split(key, 3)

    # Small shapes consistent with the module: batch=16, features=128
    # (hidden = 2*features = 256) -- lane-dense without padding.
    B, F = 16, 128
    x = jax.random.normal(k_x, (B, F), dtype=jnp.float32)
    # PyTorch nn.Linear weight layout: (out_features, in_features), no bias.
    w1 = jax.random.normal(k_w1, (2 * F, F), dtype=jnp.float32) * 0.1
    w2 = jax.random.normal(k_w2, (F, 2 * F), dtype=jnp.float32) * 0.1

    ref = residual_block_ref(x, w1, w2)

    # f32-operand path (tolerance slack only for the EUP approx reciprocal).
    w1t, w2t = precompute_weights(w1, w2)
    out = jax.block_until_ready(residual_block(x, w1t, w2t))
    assert out.shape == (B, F)
    assert jnp.allclose(out, ref, atol=2e-2, rtol=2e-2), "f32 mismatch vs reference"

    # bf16 MXU-operand path (f32 accumulation; SiLU + residual stay in f32).
    w1t_bf, w2t_bf = precompute_weights(w1, w2, compute_dtype=jnp.bfloat16)
    out_bf = jax.block_until_ready(residual_block(x, w1t_bf, w2t_bf))
    assert jnp.allclose(out_bf, ref, atol=1e-1, rtol=1e-1), "bf16 mismatch vs reference"

    # Non-128-aligned features exercise the zero-pad (lane-dense) path.
    Bs, Fs = 8, 32
    xs = jax.random.normal(k_x, (Bs, Fs), dtype=jnp.float32)
    w1s = jax.random.normal(k_w1, (2 * Fs, Fs), dtype=jnp.float32) * 0.1
    w2s = jax.random.normal(k_w2, (Fs, 2 * Fs), dtype=jnp.float32) * 0.1
    w1ts, w2ts = precompute_weights(w1s, w2s)
    outs = jax.block_until_ready(residual_block(xs, w1ts, w2ts))
    refs = residual_block_ref(xs, w1s, w2s)
    assert outs.shape == (Bs, Fs)
    assert jnp.allclose(outs, refs, atol=2e-2, rtol=2e-2), "padded-path mismatch"

    print("KERNEL_OK")
</pallas_src>

<mosaic_0001>
module attributes {stable_mosaic.version = 11 : i64} {
  func.func @residual_block_kernel(%arg0: i32, %arg1: i32, %arg2: memref<16x128xf32, #tpu.memory_space<vmem>>, %arg3: memref<128x256xf32, #tpu.memory_space<vmem>>, %arg4: memref<256x128xf32, #tpu.memory_space<vmem>>, %arg5: memref<16x128xf32, #tpu.memory_space<vmem>>, %arg6: memref<16x128xf32, #tpu.memory_space<vmem>>) attributes {dimension_semantics = [#tpu.dimension_semantics<parallel>, #tpu.dimension_semantics<arbitrary>], iteration_bounds = array<i64: 1, 1>, scalar_prefetch = 0 : i64, scratch_operands = 1 : i64, tpu.core_type = #tpu.core_type<tc>, window_params = [{transform_indices = @transform_0, window_bounds = array<i64: 16, 128>}, {transform_indices = @transform_1, window_bounds = array<i64: 128, 256>}, {transform_indices = @transform_2, window_bounds = array<i64: 256, 128>}, {transform_indices = @transform_3, window_bounds = array<i64: 16, 128>}]} {
    %c0 = arith.constant 0 : index
    %c0_0 = arith.constant 0 : index
    %0 = vector.load %arg2[%c0, %c0_0] : memref<16x128xf32, #tpu.memory_space<vmem>>, vector<16x128xf32>
    %c0_i32 = arith.constant 0 : i32
    %1 = arith.cmpi eq, %arg1, %c0_i32 : i32
    %2 = arith.extui %1 : i1 to i32
    %c0_i32_1 = arith.constant 0 : i32
    %3 = arith.cmpi ne, %2, %c0_i32_1 : i32
    scf.if %3 {
      %c0_15 = arith.constant 0 : index
      %c0_16 = arith.constant 0 : index
      %21 = vector.load %arg6[%c0_15, %c0_16] : memref<16x128xf32, #tpu.memory_space<vmem>>, vector<16x128xf32>
      tpu.vector_store %arg6[%c0_15, %c0_16], %0 {strides = array<i32>} : memref<16x128xf32, #tpu.memory_space<vmem>>, vector<16x128xf32>,
    } else {
    }
    %c0_2 = arith.constant 0 : index
    %c0_3 = arith.constant 0 : index
    %4 = vector.load %arg3[%c0_2, %c0_3] : memref<128x256xf32, #tpu.memory_space<vmem>>, vector<128x256xf32>
    %cst = arith.constant dense<0.000000e+00> : vector<16x256xf32>
    %5 = tpu.matmul %0, %4, %cst {dimension_numbers = #tpu.dot_dimension_numbers<[1], [0], [0], [1], [0, 0, 1, 1], [], []>} : vector<16x128xf32>, vector<128x256xf32>, vector<16x256xf32> -> vector<16x256xf32>
    %cst_4 = arith.constant 0.000000e+00 : f32
    %6 = vector.broadcast %cst_4 : f32 to vector<16x256xf32>
    %7 = arith.subf %6, %5 : vector<16x256xf32>
    %8 = math.exp %7 : vector<16x256xf32>
    %cst_5 = arith.constant 1.000000e+00 : f32
    %9 = vector.broadcast %cst_5 : f32 to vector<16x256xf32>
    %10 = arith.addf %9, %8 : vector<16x256xf32>
    %11 = tpu.reciprocal %10 {approx = true} : vector<16x256xf32> -> vector<16x256xf32>
    %12 = arith.mulf %5, %11 : vector<16x256xf32>
    %c0_6 = arith.constant 0 : index
    %c0_7 = arith.constant 0 : index
    %13 = vector.load %arg6[%c0_6, %c0_7] : memref<16x128xf32, #tpu.memory_space<vmem>>, vector<16x128xf32>
    %c0_8 = arith.constant 0 : index
    %c0_9 = arith.constant 0 : index
    %14 = vector.load %arg4[%c0_8, %c0_9] : memref<256x128xf32, #tpu.memory_space<vmem>>, vector<256x128xf32>
    %cst_10 = arith.constant dense<0.000000e+00> : vector<16x128xf32>
    %15 = tpu.matmul %12, %14, %cst_10 {dimension_numbers = #tpu.dot_dimension_numbers<[1], [0], [0], [1], [0, 0, 1, 1], [], []>} : vector<16x256xf32>, vector<256x128xf32>, vector<16x128xf32> -> vector<16x128xf32>
    %16 = arith.addf %13, %15 : vector<16x128xf32>
    %c0_11 = arith.constant 0 : index
    %c0_12 = arith.constant 0 : index
    %17 = vector.load %arg6[%c0_11, %c0_12] : memref<16x128xf32, #tpu.memory_space<vmem>>, vector<16x128xf32>
    tpu.vector_store %arg6[%c0_11, %c0_12], %16 {strides = array<i32>} : memref<16x128xf32, #tpu.memory_space<vmem>>, vector<16x128xf32>,
    %c0_i32_13 = arith.constant 0 : i32
    %18 = arith.cmpi eq, %arg1, %c0_i32_13 : i32
    %19 = arith.extui %18 : i1 to i32
    %c0_i32_14 = arith.constant 0 : i32
    %20 = arith.cmpi ne, %19, %c0_i32_14 : i32
    scf.if %20 {
      %c0_15 = arith.constant 0 : index
      %c0_16 = arith.constant 0 : index
      %21 = vector.load %arg6[%c0_15, %c0_16] : memref<16x128xf32, #tpu.memory_space<vmem>>, vector<16x128xf32>
      %c0_17 = arith.constant 0 : index
      %c0_18 = arith.constant 0 : index
      %22 = vector.load %arg5[%c0_17, %c0_18] : memref<16x128xf32, #tpu.memory_space<vmem>>, vector<16x128xf32>
      tpu.vector_store %arg5[%c0_17, %c0_18], %21 {strides = array<i32>} : memref<16x128xf32, #tpu.memory_space<vmem>>, vector<16x128xf32>,
    } else {
    }
    return
  }
  func.func @transform_0(%arg0: i32, %arg1: i32) -> (i32, i32) {
    %c0_i32 = arith.constant 0 : i32
    %c0_i32_0 = arith.constant 0 : i32
    return %arg0, %c0_i32 : i32, i32
  }
  func.func @transform_1(%arg0: i32, %arg1: i32) -> (i32, i32) {
    %c0_i32 = arith.constant 0 : i32
    %c0_i32_0 = arith.constant 0 : i32
    return %c0_i32, %arg1 : i32, i32
  }
  func.func @transform_2(%arg0: i32, %arg1: i32) -> (i32, i32) {
    %c0_i32 = arith.constant 0 : i32
    %c0_i32_0 = arith.constant 0 : i32
    return %arg1, %c0_i32 : i32, i32
  }
  func.func @transform_3(%arg0: i32, %arg1: i32) -> (i32, i32) {
    %c0_i32 = arith.constant 0 : i32
    %c0_i32_0 = arith.constant 0 : i32
    return %arg0, %c0_i32 : i32, i32
  }
}

</mosaic_0001>

<llo_original>
// kernel: tpu_custom_call.1
$region0: #{tpu_custom_call.1}
  #allocation0 [shape = 'u32[]', space=smem, size = 0x4, offset = 0x4, fixed_abs, tag = 'smem constant byte address 0x4 - core index']
  #allocation1 [shape = 'u32[144,128]{1,0:T(1,128)}', space=vmem, size = 0x12000, scoped, tag = 'internal scratch']
  #allocation2 [shape = 'f32[16,128]{1,0:T(8,128)}', space=vmem, size = 0x2000, scoped, tag = 'scratch operand']
  %s0 = inlined_call_operand.hbm [shape: f32[16,128], index: 0, kind: input, shape index: {}]
  %s1 = inlined_call_operand.hbm [shape: f32[128,256], index: 1, kind: input, shape index: {}]
  %s2 = inlined_call_operand.hbm [shape: f32[256,128], index: 2, kind: input, shape index: {}]
  %s3 = inlined_call_operand.hbm [shape: f32[16,128], index: 3, kind: output, shape index: {}]
  %s4 = sld [smem:[#allocation0]]
  $region42: #{tpu_custom_call.1} parent=0
    _
  %s6 = ssub.s32 1, %s4
  %s7 = scalar_select 0, %s6, %s4
  $region1: #{tpu_custom_call.1} parent=0
    #allocation3 [shape = 'u8[8192]{0}', space=vmem, size = 0x2000, scoped, tag = 'input window, operand 0, single buffered']
    #allocation4 [shape = 's32[1]{0}', space=sflag, size = 0x4, scoped, tag = 'scoped memory for tpu_custom_call.1']
    #allocation5 [shape = 's32[1]{0}', space=sflag, size = 0x4, scoped, tag = 'scoped memory for tpu_custom_call.1']
    #allocation6 [shape = 'u8[131072]{0}', space=vmem, size = 0x20000, scoped, tag = 'input window, operand 1, single buffered']
    #allocation7 [shape = 's32[1]{0}', space=sflag, size = 0x4, scoped, tag = 'scoped memory for tpu_custom_call.1']
    #allocation8 [shape = 'u8[131072]{0}', space=vmem, size = 0x20000, scoped, tag = 'input window, operand 2, single buffered']
    #allocation9 [shape = 'u8[8192]{0}', space=vmem, size = 0x2000, scoped, tag = 'output window, operand 0, single buffered']
    %8 = vsyncpa [#allocation4], 0
    %9 = vsyncpa [#allocation7], 0
    %10 = vsyncpa [#allocation5], 0
    // Predicated region
    $region2: #{tpu_custom_call.1} parent=1 // pred_check
      _
    $region3: #{tpu_custom_call.1} parent=1 // pred_check_branch
      %12 = sbr.rel (0) target = $region5
    $region4: #{tpu_custom_call.1} parent=1 // pred_region
      %s14 = ssub.s32 256, 256
      %15 = vsyncadd [#allocation4], %s14
      %s16 = sshll.u32 [#allocation3], 4
      %s17 = int_to_ptr.vmem [resolvable:$true] %s16
      %22 = dma.hbm_to_vmem [thread:$0]  %s0, 256, %s17, [#allocation4], 128, 128, 8
    $region5: #{tpu_custom_call.1} parent=1 // pred_fallthru
      _
    // Predicated region
    $region6: #{tpu_custom_call.1} parent=1 // pred_check
      _
    $region7: #{tpu_custom_call.1} parent=1 // pred_check_branch
      %24 = sbr.rel (0) target = $region9
    $region8: #{tpu_custom_call.1} parent=1 // pred_region
      %s26 = ssub.s32 4096, 4096
      %27 = vsyncadd [#allocation7], %s26
      %s28 = sshll.u32 [#allocation6], 4
      %s29 = int_to_ptr.vmem [resolvable:$true] %s28
      %34 = dma.hbm_to_vmem [thread:$0]  %s1, 4096, %s29, [#allocation7], 256, 256, 16
    $region9: #{tpu_custom_call.1} parent=1 // pred_fallthru
      _
    // Predicated region
    $region10: #{tpu_custom_call.1} parent=1 // pred_check
      _
    $region11: #{tpu_custom_call.1} parent=1 // pred_check_branch
      %36 = sbr.rel (0) target = $region13
    $region12: #{tpu_custom_call.1} parent=1 // pred_region
      %s38 = ssub.s32 4096, 4096
      %39 = vsyncadd [#allocation7], %s38
      %s40 = sshll.u32 [#allocation8], 4
      %s41 = int_to_ptr.vmem [resolvable:$true] %s40
      %46 = dma.hbm_to_vmem [thread:$0]  %s2, 4096, %s41, [#allocation7], 128, 128, 8
    $region13: #{tpu_custom_call.1} parent=1 // pred_fallthru
      _
    // Predicated region
    $region14: #{tpu_custom_call.1} parent=1 // pred_check
      _
    $region15: #{tpu_custom_call.1} parent=1 // pred_check_branch
      %48 = sbr.rel (0) target = $region17
    $region16: #{tpu_custom_call.1} parent=1 // pred_region
      %49 = dma.done [#allocation4], 256
    $region17: #{tpu_custom_call.1} parent=1 // pred_fallthru
      _
    // Predicated region
    $region18: #{tpu_custom_call.1} parent=1 // pred_check
      _
    $region19: #{tpu_custom_call.1} parent=1 // pred_check_branch
      %51 = sbr.rel (0) target = $region21
    $region20: #{tpu_custom_call.1} parent=1 // pred_region
      %52 = dma.done [#allocation7], 4096
    $region21: #{tpu_custom_call.1} parent=1 // pred_fallthru
      _
    // Predicated region
    $region22: #{tpu_custom_call.1} parent=1 // pred_check
      _
    $region23: #{tpu_custom_call.1} parent=1 // pred_check_branch
      %54 = sbr.rel (0) target = $region25
    $region24: #{tpu_custom_call.1} parent=1 // pred_region
      %55 = dma.done [#allocation7], 4096
    $region25: #{tpu_custom_call.1} parent=1 // pred_fallthru
      _
    %v56 = vld [vmem:[#allocation3] sm:$0xff]
    %v57 = vld [vmem:[#allocation3 + $0x8] sm:$0xff]
    %p58 = scmp.eq.s32.totalorder 0, 0
    // Predicated region
    $region26: #{tpu_custom_call.1} parent=1 // pred_check
      %p59 = pneg %p58
    $region27: #{tpu_custom_call.1} parent=1 // pred_check_branch
      %61 = sbr.rel (%p59) target = $region29
    $region28: #{tpu_custom_call.1} parent=1 // pred_region
      %62 = vst [vmem:[#allocation2] sm:$0xff] %v56
      %63 = vst [vmem:[#allocation2 + $0x8] sm:$0xff] %v57
    $region29: #{tpu_custom_call.1} parent=1 // pred_fallthru
      _
    %v64 = vld [vmem:[#allocation6] sm:$0xff]
    %v65 = vld [vmem:[#allocation6 + $0x8] sm:$0xff]
    %v66 = vld [vmem:[#allocation6 + $0x10] sm:$0xff]
    %v67 = vld [vmem:[#allocation6 + $0x18] sm:$0xff]
    %v68 = vld [vmem:[#allocation6 + $0x20] sm:$0xff]
    %v69 = vld [vmem:[#allocation6 + $0x28] sm:$0xff]
    %v70 = vld [vmem:[#allocation6 + $0x30] sm:$0xff]
    %v71 = vld [vmem:[#allocation6 + $0x38] sm:$0xff]
    %v72 = vld [vmem:[#allocation6 + $0x40] sm:$0xff]
    %v73 = vld [vmem:[#allocation6 + $0x48] sm:$0xff]
    %v74 = vld [vmem:[#allocation6 + $0x50] sm:$0xff]
    %v75 = vld [vmem:[#allocation6 + $0x58] sm:$0xff]
    %v76 = vld [vmem:[#allocation6 + $0x60] sm:$0xff]
    %v77 = vld [vmem:[#allocation6 + $0x68] sm:$0xff]
    %v78 = vld [vmem:[#allocation6 + $0x70] sm:$0xff]
    %v79 = vld [vmem:[#allocation6 + $0x78] sm:$0xff]
    %v80 = vld [vmem:[#allocation6 + $0x80] sm:$0xff]
    %v81 = vld [vmem:[#allocation6 + $0x88] sm:$0xff]
    %v82 = vld [vmem:[#allocation6 + $0x90] sm:$0xff]
    %v83 = vld [vmem:[#allocation6 + $0x98] sm:$0xff]
    %v84 = vld [vmem:[#allocation6 + $0xa0] sm:$0xff]
    %v85 = vld [vmem:[#allocation6 + $0xa8] sm:$0xff]
    %v86 = vld [vmem:[#allocation6 + $0xb0] sm:$0xff]
    %v87 = vld [vmem:[#allocation6 + $0xb8] sm:$0xff]
    %v88 = vld [vmem:[#allocation6 + $0xc0] sm:$0xff]
    %v89 = vld [vmem:[#allocation6 + $0xc8] sm:$0xff]
    %v90 = vld [vmem:[#allocation6 + $0xd0] sm:$0xff]
    %v91 = vld [vmem:[#allocation6 + $0xd8] sm:$0xff]
    %v92 = vld [vmem:[#allocation6 + $0xe0] sm:$0xff]
    %v93 = vld [vmem:[#allocation6 + $0xe8] sm:$0xff]
    %v94 = vld [vmem:[#allocation6 + $0xf0] sm:$0xff]
    %v95 = vld [vmem:[#allocation6 + $0xf8] sm:$0xff]
    %96 = vmatprep.subr.mxu0 %v65
    %97 = vmatpush1.msra.mxu0 %v64
    %98 = vmatprep.subr.mxu0 %v67
    %99 = vmatpush1.msra.mxu0 %v66
    %100 = vmatprep.subr.mxu0 %v69
    %101 = vmatpush1.msra.mxu0 %v68
    %102 = vmatprep.subr.mxu0 %v71
    %103 = vmatpush1.msra.mxu0 %v70
    %104 = vmatprep.subr.mxu0 %v73
    %105 = vmatpush1.msra.mxu0 %v72
    %106 = vmatprep.subr.mxu0 %v75
    %107 = vmatpush1.msra.mxu0 %v74
    %108 = vmatprep.subr.mxu0 %v77
    %109 = vmatpush1.msra.mxu0 %v76
    %110 = vmatprep.subr.mxu0 %v79
    %111 = vmatpush1.msra.mxu0 %v78
    %112 = vmatprep.subr.mxu0 %v81
    %113 = vmatpush1.msra.mxu0 %v80
    %114 = vmatprep.subr.mxu0 %v83
    %115 = vmatpush1.msra.mxu0 %v82
    %116 = vmatprep.subr.mxu0 %v85
    %117 = vmatpush1.msra.mxu0 %v84
    %118 = vmatprep.subr.mxu0 %v87
    %119 = vmatpush1.msra.mxu0 %v86
    %120 = vmatprep.subr.mxu0 %v89
    %121 = vmatpush1.msra.mxu0 %v88
    %122 = vmatprep.subr.mxu0 %v91
    %123 = vmatpush1.msra.mxu0 %v90
    %124 = vmatprep.subr.mxu0 %v93
    %125 = vmatpush1.msra.mxu0 %v92
    %126 = vmatprep.subr.mxu0 %v95
    %127 = vmatpush1.msra.mxu0 %v94
    %128 = vmatprep.subr.mxu0 0.0
    %129 = vmatpush1.msra.mxu0 0.0
    %130 = vmatprep.subr.mxu0 0.0
    %131 = vmatpush1.msra.mxu0 0.0
    %132 = vmatprep.subr.mxu0 0.0
    %133 = vmatpush1.msra.mxu0 0.0
    %134 = vmatprep.subr.mxu0 0.0
    %135 = vmatpush1.msra.mxu0 0.0
    %136 = vmatprep.subr.mxu0 0.0
    %137 = vmatpush1.msra.mxu0 0.0
    %138 = vmatprep.subr.mxu0 0.0
    %139 = vmatpush1.msra.mxu0 0.0
    %140 = vmatprep.subr.mxu0 0.0
    %141 = vmatpush1.msra.mxu0 0.0
    %142 = vmatprep.subr.mxu0 0.0
    %143 = vmatpush1.msra.mxu0 0.0
    %144 = vmatprep.subr.mxu0 0.0
    %145 = vmatpush1.msra.mxu0 0.0
    %146 = vmatprep.subr.mxu0 0.0
    %147 = vmatpush1.msra.mxu0 0.0
    %148 = vmatprep.subr.mxu0 0.0
    %149 = vmatpush1.msra.mxu0 0.0
    %150 = vmatprep.subr.mxu0 0.0
    %151 = vmatpush1.msra.mxu0 0.0
    %152 = vmatprep.subr.mxu0 0.0
    %153 = vmatpush1.msra.mxu0 0.0
    %154 = vmatprep.subr.mxu0 0.0
    %155 = vmatpush1.msra.mxu0 0.0
    %156 = vmatprep.subr.mxu0 0.0
    %157 = vmatpush1.msra.mxu0 0.0
    %158 = vmatprep.subr.mxu0 0.0
    %159 = vmatpush1.msra.mxu0 0.0
    %160 = vmatprep.mubr.f32.mxu0 0.0
    %161 = vmatmul.mubr.f32.gmra.mrb[0].mxu0 %v56
    %v162 = vpop.f32.mrb[0].mxu0
    %v163 = vadd.f32 0.0, %v162
    %v164 = vpop.f32.mrb[0].mxu0
    %v165 = vadd.f32 0.0, %v164
    %166 = vmatprep.mubr.f32.mxu0 0.0
    %167 = vmatmul.mubr.f32.gmra.mrb[0].mxu0 %v57
    %v168 = vpop.f32.mrb[0].mxu0
    %v169 = vadd.f32 0.0, %v168
    %v170 = vpop.f32.mrb[0].mxu0
    %v171 = vadd.f32 0.0, %v170
    %172 = vdwg.mxu0
    %v173 = vsub.f32 0.0, %v163
    %v174 = vsub.f32 0.0, %v165
    %v175 = vsub.f32 0.0, %v169
    %v176 = vsub.f32 0.0, %v171
    %v177 = vmul.f32 %v173, 1.442695
    %v178 = vpow.pop %v177
    %v179 = vmul.f32 %v174, 1.442695
    %v180 = vpow.pop %v179
    %v181 = vmul.f32 %v175, 1.442695
    %v182 = vpow.pop %v181
    %v183 = vmul.f32 %v176, 1.442695
    %v184 = vpow.pop %v183
    %v185 = vadd.f32 %v178, 1.0
    %v186 = vadd.f32 %v180, 1.0
    %v187 = vadd.f32 %v182, 1.0
    %v188 = vadd.f32 %v184, 1.0
    %v189 = vrcp.pop %v185
    %v190 = vrcp.pop %v186
    %v191 = vrcp.pop %v187
    %v192 = vrcp.pop %v188
    %v193 = vmul.f32 %v163, %v189
    %v194 = vmul.f32 %v165, %v190
    %v195 = vmul.f32 %v169, %v191
    %v196 = vmul.f32 %v171, %v192
    %v197 = vld [vmem:[#allocation2] sm:$0xff]
    %v198 = vld [vmem:[#allocation2 + $0x8] sm:$0xff]
    %v199 = vld [vmem:[#allocation8] sm:$0xff]
    %v200 = vld [vmem:[#allocation8 + $0x8] sm:$0xff]
    %v201 = vld [vmem:[#allocation8 + $0x10] sm:$0xff]
    %v202 = vld [vmem:[#allocation8 + $0x18] sm:$0xff]
    %v203 = vld [vmem:[#allocation8 + $0x20] sm:$0xff]
    %v204 = vld [vmem:[#allocation8 + $0x28] sm:$0xff]
    %v205 = vld [vmem:[#allocation8 + $0x30] sm:$0xff]
    %v206 = vld [vmem:[#allocation8 + $0x38] sm:$0xff]
    %v207 = vld [vmem:[#allocation8 + $0x40] sm:$0xff]
    %v208 = vld [vmem:[#allocation8 + $0x48] sm:$0xff]
    %v209 = vld [vmem:[#allocation8 + $0x50] sm:$0xff]
    %v210 = vld [vmem:[#allocation8 + $0x58] sm:$0xff]
    %v211 = vld [vmem:[#allocation8 + $0x60] sm:$0xff]
    %v212 = vld [vmem:[#allocation8 + $0x68] sm:$0xff]
    %v213 = vld [vmem:[#allocation8 + $0x70] sm:$0xff]
    %v214 = vld [vmem:[#allocation8 + $0x78] sm:$0xff]
    %v215 = vld [vmem:[#allocation8 + $0x80] sm:$0xff]
    %v216 = vld [vmem:[#allocation8 + $0x88] sm:$0xff]
    %v217 = vld [vmem:[#allocation8 + $0x90] sm:$0xff]
    %v218 = vld [vmem:[#allocation8 + $0x98] sm:$0xff]
    %v219 = vld [vmem:[#allocation8 + $0xa0] sm:$0xff]
    %v220 = vld [vmem:[#allocation8 + $0xa8] sm:$0xff]
    %v221 = vld [vmem:[#allocation8 + $0xb0] sm:$0xff]
    %v222 = vld [vmem:[#allocation8 + $0xb8] sm:$0xff]
    %v223 = vld [vmem:[#allocation8 + $0xc0] sm:$0xff]
    %v224 = vld [vmem:[#allocation8 + $0xc8] sm:$0xff]
    %v225 = vld [vmem:[#allocation8 + $0xd0] sm:$0xff]
    %v226 = vld [vmem:[#allocation8 + $0xd8] sm:$0xff]
    %v227 = vld [vmem:[#allocation8 + $0xe0] sm:$0xff]
    %v228 = vld [vmem:[#allocation8 + $0xe8] sm:$0xff]
    %v229 = vld [vmem:[#allocation8 + $0xf0] sm:$0xff]
    %v230 = vld [vmem:[#allocation8 + $0xf8] sm:$0xff]
    %231 = vmatprep.subr.mxu0 0.0
    %232 = vmatpush1.msra.mxu0 %v199
    %233 = vmatprep.subr.mxu0 0.0
    %234 = vmatpush1.msra.mxu0 %v200
    %235 = vmatprep.subr.mxu0 0.0
    %236 = vmatpush1.msra.mxu0 %v201
    %237 = vmatprep.subr.mxu0 0.0
    %238 = vmatpush1.msra.mxu0 %v202
    %239 = vmatprep.subr.mxu0 0.0
    %240 = vmatpush1.msra.mxu0 %v203
    %241 = vmatprep.subr.mxu0 0.0
    %242 = vmatpush1.msra.mxu0 %v204
    %243 = vmatprep.subr.mxu0 0.0
    %244 = vmatpush1.msra.mxu0 %v205
    %245 = vmatprep.subr.mxu0 0.0
    %246 = vmatpush1.msra.mxu0 %v206
    %247 = vmatprep.subr.mxu0 0.0
    %248 = vmatpush1.msra.mxu0 %v207
    %249 = vmatprep.subr.mxu0 0.0
    %250 = vmatpush1.msra.mxu0 %v208
    %251 = vmatprep.subr.mxu0 0.0
    %252 = vmatpush1.msra.mxu0 %v209
    %253 = vmatprep.subr.mxu0 0.0
    %254 = vmatpush1.msra.mxu0 %v210
    %255 = vmatprep.subr.mxu0 0.0
    %256 = vmatpush1.msra.mxu0 %v211
    %257 = vmatprep.subr.mxu0 0.0
    %258 = vmatpush1.msra.mxu0 %v212
    %259 = vmatprep.subr.mxu0 0.0
    %260 = vmatpush1.msra.mxu0 %v213
    %261 = vmatprep.subr.mxu0 0.0
    %262 = vmatpush1.msra.mxu0 %v214
    %263 = vmatprep.subr.mxu0 0.0
    %264 = vmatpush1.msra.mxu0 %v215
    %265 = vmatprep.subr.mxu0 0.0
    %266 = vmatpush1.msra.mxu0 %v216
    %267 = vmatprep.subr.mxu0 0.0
    %268 = vmatpush1.msra.mxu0 %v217
    %269 = vmatprep.subr.mxu0 0.0
    %270 = vmatpush1.msra.mxu0 %v218
    %271 = vmatprep.subr.mxu0 0.0
    %272 = vmatpush1.msra.mxu0 %v219
    %273 = vmatprep.subr.mxu0 0.0
    %274 = vmatpush1.msra.mxu0 %v220
    %275 = vmatprep.subr.mxu0 0.0
    %276 = vmatpush1.msra.mxu0 %v221
    %277 = vmatprep.subr.mxu0 0.0
    %278 = vmatpush1.msra.mxu0 %v222
    %279 = vmatprep.subr.mxu0 0.0
    %280 = vmatpush1.msra.mxu0 %v223
    %281 = vmatprep.subr.mxu0 0.0
    %282 = vmatpush1.msra.mxu0 %v224
    %283 = vmatprep.subr.mxu0 0.0
    %284 = vmatpush1.msra.mxu0 %v225
    %285 = vmatprep.subr.mxu0 0.0
    %286 = vmatpush1.msra.mxu0 %v226
    %287 = vmatprep.subr.mxu0 0.0
    %288 = vmatpush1.msra.mxu0 %v227
    %289 = vmatprep.subr.mxu0 0.0
    %290 = vmatpush1.msra.mxu0 %v228
    %291 = vmatprep.subr.mxu0 0.0
    %292 = vmatpush1.msra.mxu0 %v229
    %293 = vmatprep.subr.mxu0 0.0
    %294 = vmatpush1.msra.mxu0 %v230
    %295 = vmatprep.mubr.f32.mxu0 %v194
    %296 = vmatmul.mubr.f32.gmra.mrb[0].mxu0 %v193
    %v297 = vpop.f32.mrb[0].mxu0
    %v298 = vadd.f32 0.0, %v297
    %v299 = vpop.f32.mrb[0].mxu0
    %300 = vmatprep.mubr.f32.mxu0 %v196
    %301 = vmatmul.mubr.f32.gmra.mrb[0].mxu0 %v195
    %v302 = vpop.f32.mrb[0].mxu0
    %v303 = vadd.f32 0.0, %v302
    %v304 = vpop.f32.mrb[0].mxu0
    %305 = vdwg.mxu0
    %v306 = vadd.f32 %v197, %v298
    %v307 = vadd.f32 %v198, %v303
    %308 = vst [vmem:[#allocation2] sm:$0xff] %v306
    %309 = vst [vmem:[#allocation2 + $0x8] sm:$0xff] %v307
    // Predicated region
    $region30: #{tpu_custom_call.1} parent=1 // pred_check
      %p310 = pneg %p58
    $region31: #{tpu_custom_call.1} parent=1 // pred_check_branch
      %312 = sbr.rel (%p310) target = $region33
    $region32: #{tpu_custom_call.1} parent=1 // pred_region
      %v313 = vld [vmem:[#allocation2] sm:$0xff]
      %v314 = vld [vmem:[#allocation2 + $0x8] sm:$0xff]
      %315 = vst [vmem:[#allocation9] sm:$0xff] %v313
      %316 = vst [vmem:[#allocation9 + $0x8] sm:$0xff] %v314
    $region33: #{tpu_custom_call.1} parent=1 // pred_fallthru
      _
    // Predicated region
    $region34: #{tpu_custom_call.1} parent=1 // pred_check
      _
    $region35: #{tpu_custom_call.1} parent=1 // pred_check_branch
      %318 = sbr.rel (0) target = $region37
    $region36: #{tpu_custom_call.1} parent=1 // pred_region
      %s320 = ssub.s32 256, 256
      %321 = vsyncadd [#allocation5], %s320
      %s322 = sshll.u32 [#allocation9], 4
      %s323 = int_to_ptr.vmem [resolvable:$true] %s322
      %328 = dma.vmem_to_hbm [thread:$0]  %s323, 256, %s3, [#allocation5], 128, 128, 8
    $region37: #{tpu_custom_call.1} parent=1 // pred_fallthru
      _
    // Predicated region
    $region38: #{tpu_custom_call.1} parent=1 // pred_check
      _
    $region39: #{tpu_custom_call.1} parent=1 // pred_check_branch
      %330 = sbr.rel (0) target = $region41
    $region40: #{tpu_custom_call.1} parent=1 // pred_region
      %331 = dma.done [#allocation5], 256
    $region41: #{tpu_custom_call.1} parent=1 // pred_fallthru
      _
    %332 = vsyncpa [#allocation4], 1
    %333 = vsyncpa [#allocation7], 1
    %334 = vsyncpa [#allocation5], 1

</llo_original>
